<compile_context>
chip_gen: v7x
topology: tpu7x:2x2x1
jax: 0.10.0
libtpu: 0.0.40
codegen_flags: <defaults>
</compile_context>

<pallas_src>
import math

import numpy as np
import jax
import jax.numpy as jnp
from jax.experimental import pallas as pl
from jax.experimental.pallas import tpu as pltpu

_MIB = 1 << 20


def _round_up(x, m):
    return ((x + m - 1) // m) * m


def _vmem_cap():
    try:
        return int(pltpu.get_tpu_info().vmem_capacity_bytes)
    except Exception:
        return 64 * _MIB  # conservative (v7x per-TC capacity)


# ---------------------------------------------------------------------------
# One-time probe: validate pltpu.roll direction for the relative shift.
# ---------------------------------------------------------------------------
_USE_ROLL = None


def _relative_shift_uses_roll():
    global _USE_ROLL
    if _USE_ROLL is not None:
        return _USE_ROLL
    T, Tp = 8, 128
    x = np.arange(T * Tp, dtype=np.float32).reshape(T, Tp)
    want = np.stack([x[i, (T - 1 - i):(2 * T - 1 - i)] for i in range(T)])

    def probe(x_ref, o_ref):
        y = pltpu.roll(x_ref[...], 0, 1, stride=1, stride_axis=0)
        y = pltpu.roll(y, (Tp - (T - 1)) % Tp, 1)
        o_ref[...] = y[:, :T]

    try:
        got = pl.pallas_call(
            probe, out_shape=jax.ShapeDtypeStruct((T, T), jnp.float32)
        )(jnp.asarray(x))
        _USE_ROLL = bool(np.allclose(np.asarray(got), want))
    except Exception:
        _USE_ROLL = False
    return _USE_ROLL


# ---------------------------------------------------------------------------
# Projection GEMMs: y = x @ w + b (bf16 MXU operands, f32 accumulate),
# M-tiled with padding, explicit (chip-clamped) scoped-VMEM limit.
# ---------------------------------------------------------------------------
def _gemm_plan(M, K, N, x_itemsize, out_itemsize):
    cap = _vmem_cap()
    bm = 512 if M >= 1024 else (256 if M >= 256 else _round_up(max(M, 8), 8))

    def est(b):
        return (K * N * 2                       # resident bf16 weight
                + 2 * b * K * x_itemsize        # double-buffered x tile
                + 2 * b * N * (4 + out_itemsize)
                + N * 4 + (2 << 20))

    while bm > 128 and est(bm) > cap - 16 * _MIB:
        bm //= 2
    M_pad = _round_up(M, bm)
    vmem_limit = int(min(cap - 8 * _MIB, max(32 * _MIB, int(1.3 * est(bm)))))
    return bm, M_pad, vmem_limit


def _linear_kernel(x_ref, w_ref, b_ref, o_ref):
    x = x_ref[...].astype(jnp.bfloat16)
    acc = jnp.dot(x, w_ref[...], preferred_element_type=jnp.float32) + b_ref[...]
    o_ref[...] = acc.astype(o_ref.dtype)


def _qkv_proj_kernel(x_ref, w_ref, b_ref, q_ref, k_ref, v_ref):
    x = x_ref[...].astype(jnp.bfloat16)
    acc = jnp.dot(x, w_ref[...], preferred_element_type=jnp.float32) + b_ref[...]
    d = q_ref.shape[-1]
    q_ref[...] = acc[:, :d].astype(q_ref.dtype)
    k_ref[...] = acc[:, d:2 * d].astype(k_ref.dtype)
    v_ref[...] = acc[:, 2 * d:].astype(v_ref.dtype)


def pallas_linear(x, w, b, out_dtype=jnp.float32):
    """x: (M, K), w: (K, N), b: (N,) -> (M, N) out_dtype."""
    M, K = x.shape
    N = w.shape[1]
    bm, M_pad, vmem_limit = _gemm_plan(M, K, N, x.dtype.itemsize,
                                       jnp.dtype(out_dtype).itemsize)
    xp = jnp.pad(x, ((0, M_pad - M), (0, 0))) if M_pad != M else x
    w16 = w.astype(jnp.bfloat16)
    b2 = b.reshape(1, N).astype(jnp.float32)
    out = pl.pallas_call(
        _linear_kernel,
        out_shape=jax.ShapeDtypeStruct((M_pad, N), out_dtype),
        grid=(M_pad // bm,),
        in_specs=[pl.BlockSpec((bm, K), lambda i: (i, 0)),
                  pl.BlockSpec((K, N), lambda i: (0, 0)),
                  pl.BlockSpec((1, N), lambda i: (0, 0))],
        out_specs=pl.BlockSpec((bm, N), lambda i: (i, 0)),
        compiler_params=pltpu.CompilerParams(
            dimension_semantics=("parallel",), vmem_limit_bytes=vmem_limit),
    )(xp, w16, b2)
    return out if M_pad == M else out[:M]


def pallas_qkv_proj(x, w_qkv, b_qkv, d_model):
    """Fused QKV projection with three separate bf16 outputs (no split copy)."""
    M, K = x.shape
    N = w_qkv.shape[1]  # 3 * d_model
    bm, M_pad, vmem_limit = _gemm_plan(M, K, N, x.dtype.itemsize, 2)
    xp = jnp.pad(x, ((0, M_pad - M), (0, 0))) if M_pad != M else x
    w16 = w_qkv.astype(jnp.bfloat16)
    b2 = b_qkv.reshape(1, N).astype(jnp.float32)
    q, k, v = pl.pallas_call(
        _qkv_proj_kernel,
        out_shape=tuple(jax.ShapeDtypeStruct((M_pad, d_model), jnp.bfloat16)
                        for _ in range(3)),
        grid=(M_pad // bm,),
        in_specs=[pl.BlockSpec((bm, K), lambda i: (i, 0)),
                  pl.BlockSpec((K, N), lambda i: (0, 0)),
                  pl.BlockSpec((1, N), lambda i: (0, 0))],
        out_specs=tuple(pl.BlockSpec((bm, d_model), lambda i: (i, 0))
                        for _ in range(3)),
        compiler_params=pltpu.CompilerParams(
            dimension_semantics=("parallel",), vmem_limit_bytes=vmem_limit),
    )(xp, w16, b2)
    if M_pad != M:
        q, k, v = q[:M], k[:M], v[:M]
    return q, k, v


# ---------------------------------------------------------------------------
# Fused relative-position attention.
#   grid = (batch, query-tile); k/v/pos stay resident across the query tiles.
# ---------------------------------------------------------------------------
def _make_rel_attn_kernel(num_heads, d_head, seq_len, q_tile, t_pos, n_qt,
                          use_roll):
    D = num_heads * d_head
    # group heads so every ref load / context chunk is 128-lane aligned
    hpg = 1
    if d_head < 128 and 128 % d_head == 0:
        hpg = min(num_heads, 128 // d_head)
        while num_heads % hpg:
            hpg -= 1
    gw = hpg * d_head
    n_groups = num_heads // hpg
    n_bits = (seq_len - 1).bit_length()
    nt = (((1,), (1,)), ((), ()))

    def kernel(q_ref, k_ref, v_ref, pos_ref, u_ref, vb_ref, nmask_ref, o_ref):
        # q_ref: (1,Tq,D) bf16 ; k_ref/v_ref: (1,T,D) bf16 ; pos_ref: (1,Tp,D) bf16
        # u_ref/vb_ref: (1,D) f32 (pre-scaled by 1/sqrt(dh))
        # nmask_ref: (1,M1b,T) f32 additive mask bias ; o_ref: (1,Tq,D) bf16
        neg = nmask_ref[0]                                   # (M1b, T)

        if use_roll:
            # per-row right-rotate = (global_row - (T-1)) mod Tp, decomposed as
            # strided roll (+i_local) o constant roll (base); both in [0, Tp).
            if n_qt == 1:
                base_shift = (t_pos - (seq_len - 1)) % t_pos
            else:
                base_shift = (pl.program_id(1) * q_tile
                              + (t_pos - (seq_len - 1))) % t_pos
        else:
            row = jax.lax.broadcasted_iota(jnp.int32, (q_tile, 1), 0)
            if n_qt > 1:
                row = row + pl.program_id(1) * q_tile
            amount = (seq_len - 1) - row                     # left-rotate amount

        ctx_parts = []
        for g in range(n_groups):
            sl = slice(g * gw, (g + 1) * gw)
            q_g = q_ref[0, :, sl].astype(jnp.float32)        # (Tq, gw)
            k_g = k_ref[0, :, sl]                            # (T, gw) bf16
            v_g = v_ref[0, :, sl]                            # (T, gw) bf16
            p_g = pos_ref[0, :, sl]                          # (Tp, gw) bf16
            u_g = u_ref[:, sl]                               # (1, gw) f32
            vb_g = vb_ref[:, sl]                             # (1, gw) f32

            group_ctx = []
            for hh in range(hpg):
                hs = slice(hh * d_head, (hh + 1) * d_head)
                q = q_g[:, hs]
                k = k_g[:, hs]
                v = v_g[:, hs]
                p = p_g[:, hs]
                qu = (q + u_g[:, hs]).astype(jnp.bfloat16)   # scale pre-folded
                qv = (q + vb_g[:, hs]).astype(jnp.bfloat16)

                content = jax.lax.dot_general(
                    qu, k, nt, preferred_element_type=jnp.float32)   # (Tq, T)
                pos_score = jax.lax.dot_general(
                    qv, p, nt, preferred_element_type=jnp.float32)   # (Tq, Tp)

                # relative shift: shifted[i,j] = pos_score[i, j + (T-1) - row_i]
                if use_roll:
                    x = pltpu.roll(pos_score, 0, 1, stride=1, stride_axis=0)
                    x = pltpu.roll(x, base_shift, 1)
                else:
                    x = pos_score
                    for bit in range(n_bits):
                        step = 1 << bit
                        rolled = jnp.concatenate(
                            [x[:, step:], x[:, :step]], axis=-1)
                        x = jnp.where((amount & step) != 0, rolled, x)
                shifted = x[:, :seq_len]                     # (Tq, T)

                score = content + shifted + neg
                m = jnp.max(score, axis=-1, keepdims=True)
                e = jnp.exp(score - m)
                denom = jnp.sum(e, axis=-1, keepdims=True)
                attn = e * pl.reciprocal(denom, approx=True)

                # TODO(synk): attention dropout omitted (identity in eval mode).
                group_ctx.append(
                    jnp.dot(attn.astype(jnp.bfloat16), v,
                            preferred_element_type=jnp.float32))     # (Tq, dh)

            ctx_parts.append(group_ctx[0] if hpg == 1
                             else jnp.concatenate(group_ctx, axis=-1))

        ctx = ctx_parts[0] if n_groups == 1 else jnp.concatenate(ctx_parts, -1)
        o_ref[0] = ctx.astype(o_ref.dtype)

    return kernel


def rel_mha_attention(q, k, v, pos_p, u_scaled, v_scaled, neg_mask, num_heads):
    """q/k/v: (B,T,D) bf16; pos_p: (B_pos,Tp,D) bf16 (Tp % 128 == 0);
    u_scaled/v_scaled: (1,D) f32; neg_mask: (B,M1,T) f32 additive bias."""
    B, T, D = q.shape
    B_pos, Tp, _ = pos_p.shape
    M1 = neg_mask.shape[1]
    d_head = D // num_heads
    cap = _vmem_cap()

    def est_bytes(tq):
        m1b = tq if M1 == T else 1
        io = (tq * D * 2 + 2 * T * D * 2 + Tp * D * 2 + m1b * T * 4
              + 2 * D * 4 + tq * D * 2)
        tmp = 3 * (tq * T + tq * Tp) * 4 + tq * D * 4
        return 2 * io + tmp + (2 << 20)

    # query-tile size: largest candidate whose working set fits comfortably.
    tq = T
    for cand in (T, 256, 128):
        if cand <= T and T % cand == 0:
            tq = cand
            if est_bytes(cand) <= cap - 16 * _MIB:
                break
    n_qt = T // tq
    m1b = tq if M1 == T else 1
    vmem_limit = int(min(cap - 8 * _MIB,
                         max(32 * _MIB, int(1.3 * est_bytes(tq)))))

    kernel = _make_rel_attn_kernel(num_heads, d_head, T, tq, Tp, n_qt,
                                   use_roll=_relative_shift_uses_roll())

    pos_idx = (lambda b, qi: (b, 0, 0)) if B_pos > 1 else (lambda b, qi: (0, 0, 0))
    mask_idx = (lambda b, qi: (b, qi, 0)) if M1 == T else (lambda b, qi: (b, 0, 0))

    return pl.pallas_call(
        kernel,
        out_shape=jax.ShapeDtypeStruct((B, T, D), jnp.bfloat16),
        grid=(B, n_qt),
        in_specs=[
            pl.BlockSpec((1, tq, D), lambda b, qi: (b, qi, 0)),   # q (tiled)
            pl.BlockSpec((1, T, D), lambda b, qi: (b, 0, 0)),     # k (resident)
            pl.BlockSpec((1, T, D), lambda b, qi: (b, 0, 0)),     # v (resident)
            pl.BlockSpec((1, Tp, D), pos_idx),                    # pos proj
            pl.BlockSpec((1, D), lambda b, qi: (0, 0)),           # u bias
            pl.BlockSpec((1, D), lambda b, qi: (0, 0)),           # v bias
            pl.BlockSpec((1, m1b, T), mask_idx),                  # mask bias
        ],
        out_specs=pl.BlockSpec((1, tq, D), lambda b, qi: (b, qi, 0)),
        compiler_params=pltpu.CompilerParams(
            dimension_semantics=("parallel", "parallel"),
            vmem_limit_bytes=vmem_limit),
    )(q, k, v, pos_p, u_scaled, v_scaled, neg_mask)


# ---------------------------------------------------------------------------
# Full forward pass.
# ---------------------------------------------------------------------------
def pallas_forward(params, query, key_t, value, pos_embedding, mask=None,
                   fused_qkv=None):
    d_model = params["wq"].shape[0]
    H, dh = params["u_bias"].shape
    B, T, _ = query.shape
    B_pos, T_pos, _ = pos_embedding.shape
    if T_pos != 2 * T - 1:
        raise ValueError("relative attention expects pos_embedding time == 2*T-1")
    inv_sqrt = 1.0 / math.sqrt(dh)

    # mask -> precomputed f32 additive bias (hoisted out of the kernel loops).
    if mask is None:
        neg_mask = jnp.zeros((B, 1, T), jnp.float32)
    else:
        neg_mask = jnp.where(mask > 0, jnp.float32(-1e9), jnp.float32(0.0))

    # fold 1/sqrt(d_head) into the query projection and the u/v biases.
    wq = params["wq"] * inv_sqrt
    bq = params["bq"] * inv_sqrt
    u_scaled = (params["u_bias"] * inv_sqrt).reshape(1, d_model).astype(jnp.float32)
    v_scaled = (params["v_bias"] * inv_sqrt).reshape(1, d_model).astype(jnp.float32)

    if fused_qkv is None:
        fused_qkv = (query is key_t) and (key_t is value)
    if fused_qkv:
        w_qkv = jnp.concatenate([wq, params["wk"], params["wv"]], axis=1)
        b_qkv = jnp.concatenate([bq, params["bk"], params["bv"]], axis=0)
        qp, kp, vp = pallas_qkv_proj(query.reshape(B * T, d_model), w_qkv,
                                     b_qkv, d_model)
    else:
        qp = pallas_linear(query.reshape(B * T, d_model), wq, bq,
                           out_dtype=jnp.bfloat16)
        kp = pallas_linear(key_t.reshape(B * T, d_model), params["wk"],
                           params["bk"], out_dtype=jnp.bfloat16)
        vp = pallas_linear(value.reshape(B * T, d_model), params["wv"],
                           params["bv"], out_dtype=jnp.bfloat16)
    qp = qp.reshape(B, T, d_model)
    kp = kp.reshape(B, T, d_model)
    vp = vp.reshape(B, T, d_model)

    # positional projection, length padded to a lane-dense multiple of 128
    # (zero rows project to zero — pos_proj has no bias — and are never read
    # by the relative shift for kept columns j < T).
    Tp_pad = _round_up(T_pos, 128)
    pos_padded = jnp.pad(pos_embedding, ((0, 0), (0, Tp_pad - T_pos), (0, 0)))
    p = pallas_linear(pos_padded.reshape(B_pos * Tp_pad, d_model), params["wp"],
                      jnp.zeros((d_model,), jnp.float32), out_dtype=jnp.bfloat16)
    p = p.reshape(B_pos, Tp_pad, d_model)

    ctx = rel_mha_attention(qp, kp, vp, p, u_scaled, v_scaled, neg_mask,
                            num_heads=H)
    out = pallas_linear(ctx.reshape(B * T, d_model), params["wo"], params["bo"],
                        out_dtype=jnp.float32)
    return out.reshape(B, T, d_model)


# ---------------------------------------------------------------------------
# Pure-JAX reference mirroring the PyTorch module (for validation).
# ---------------------------------------------------------------------------
def _relative_shift_ref(pos_score):
    b, h, t1, t2 = pos_score.shape
    zeros = jnp.zeros((b, h, t1, 1), pos_score.dtype)
    padded = jnp.concatenate([zeros, pos_score], axis=-1)
    padded = padded.reshape(b, h, t2 + 1, t1)
    shifted = padded[:, :, 1:].reshape(b, h, t1, t2)
    return shifted[:, :, :, : t2 // 2 + 1]


def reference_forward(params, query, key_t, value, pos_embedding, mask,
                      matmul_dtype=jnp.float32):
    d_model = params["wq"].shape[0]
    H, dh = params["u_bias"].shape
    B, T, _ = query.shape

    def mm(a, b):
        return jnp.matmul(a.astype(matmul_dtype), b.astype(matmul_dtype),
                          preferred_element_type=jnp.float32)

    q = (mm(query, params["wq"]) + params["bq"]).reshape(B, T, H, dh)
    k = (mm(key_t, params["wk"]) + params["bk"]).reshape(B, T, H, dh).transpose(0, 2, 1, 3)
    v = (mm(value, params["wv"]) + params["bv"]).reshape(B, T, H, dh).transpose(0, 2, 1, 3)
    p = mm(pos_embedding, params["wp"]).reshape(B, -1, H, dh)

    qu = (q + params["u_bias"]).transpose(0, 2, 1, 3)               # (B,H,T,dh)
    qv = (q + params["v_bias"]).transpose(0, 2, 1, 3)
    content = mm(qu, jnp.swapaxes(k, 2, 3))                         # (B,H,T,T)
    pos_score = mm(qv, p.transpose(0, 2, 3, 1))                     # (B,H,T,Tp)
    pos_score = _relative_shift_ref(pos_score)                      # (B,H,T,T)

    score = (content + pos_score) / math.sqrt(dh)
    score = jnp.where(mask[:, None] > 0, jnp.float32(-1e9), score)
    attn = jax.nn.softmax(score, axis=-1)
    ctx = mm(attn, v).transpose(0, 2, 1, 3).reshape(B, T, d_model)
    return mm(ctx, params["wo"]) + params["bo"]


if __name__ == "__main__":
    B, T, d_model, H = 2, 8, 32, 4
    dh = d_model // H
    T_pos = 2 * T - 1

    root = jax.random.PRNGKey(0)
    ks = jax.random.split(root, 16)
    s = 0.1
    params = {
        "wq": jax.random.normal(ks[0], (d_model, d_model), jnp.float32) * s,
        "bq": jax.random.normal(ks[1], (d_model,), jnp.float32) * s,
        "wk": jax.random.normal(ks[2], (d_model, d_model), jnp.float32) * s,
        "bk": jax.random.normal(ks[3], (d_model,), jnp.float32) * s,
        "wv": jax.random.normal(ks[4], (d_model, d_model), jnp.float32) * s,
        "bv": jax.random.normal(ks[5], (d_model,), jnp.float32) * s,
        "wp": jax.random.normal(ks[6], (d_model, d_model), jnp.float32) * s,  # pos_proj (no bias)
        "wo": jax.random.normal(ks[7], (d_model, d_model), jnp.float32) * s,
        "bo": jax.random.normal(ks[8], (d_model,), jnp.float32) * s,
        "u_bias": jax.random.normal(ks[9], (H, dh), jnp.float32) * s,
        "v_bias": jax.random.normal(ks[10], (H, dh), jnp.float32) * s,
    }

    x = jax.random.normal(ks[11], (B, T, d_model), jnp.float32)
    key_in = jax.random.normal(ks[12], (B, T, d_model), jnp.float32)
    value_in = jax.random.normal(ks[13], (B, T, d_model), jnp.float32)
    pos_embedding = jax.random.normal(ks[14], (B, T_pos, d_model), jnp.float32)
    # padding mask (batch, 1, time2): mask out last two keys of batch 1
    mask = jnp.zeros((B, 1, T), jnp.int32).at[1, 0, T - 2:].set(1)

    # 1) self-attention (query is key is value) -> fused 3-output QKV path
    out = jax.block_until_ready(pallas_forward(params, x, x, x, pos_embedding, mask))
    assert out.shape == (B, T, d_model), out.shape
    ref16 = reference_forward(params, x, x, x, pos_embedding, mask,
                              matmul_dtype=jnp.bfloat16)
    ref32 = reference_forward(params, x, x, x, pos_embedding, mask,
                              matmul_dtype=jnp.float32)
    err16 = float(jnp.max(jnp.abs(out - ref16)))
    err32 = float(jnp.max(jnp.abs(out - ref32)))
    assert err16 < 3e-2, f"max abs err vs bf16-matched reference = {err16}"
    assert err32 < 1.5e-1, f"max abs err vs f32 reference = {err32}"

    # 2) distinct query/key/value -> separate-projection path
    out2 = jax.block_until_ready(
        pallas_forward(params, x, key_in, value_in, pos_embedding, mask))
    ref2 = reference_forward(params, x, key_in, value_in, pos_embedding, mask,
                             matmul_dtype=jnp.bfloat16)
    err2 = float(jnp.max(jnp.abs(out2 - ref2)))
    assert err2 < 3e-2, f"max abs err (distinct q/k/v) vs reference = {err2}"

    # 3) full (batch, time1, time2) mask (no fully-masked rows)
    col = jnp.arange(T)[None, :]
    row = jnp.arange(T)[:, None]
    mask_full = jnp.broadcast_to((col > row + 4), (B, T, T)).astype(jnp.int32)
    out3 = jax.block_until_ready(
        pallas_forward(params, x, x, x, pos_embedding, mask_full))
    ref3 = reference_forward(params, x, x, x, pos_embedding, mask_full,
                             matmul_dtype=jnp.bfloat16)
    err3 = float(jnp.max(jnp.abs(out3 - ref3)))
    assert err3 < 3e-2, f"max abs err (full mask) vs reference = {err3}"

    print("KERNEL_OK")
</pallas_src>

<mosaic_0001>
module attributes {stable_mosaic.version = 11 : i64} {
  func.func @_qkv_proj_kernel(%arg0: i32, %arg1: memref<16x32xf32, #tpu.memory_space<vmem>>, %arg2: memref<32x96xbf16, #tpu.memory_space<vmem>>, %arg3: memref<1x96xf32, #tpu.memory_space<vmem>>, %arg4: memref<16x32xbf16, #tpu.memory_space<vmem>>, %arg5: memref<16x32xbf16, #tpu.memory_space<vmem>>, %arg6: memref<16x32xbf16, #tpu.memory_space<vmem>>) attributes {dimension_semantics = [#tpu.dimension_semantics<parallel>], iteration_bounds = array<i64: 1>, scalar_prefetch = 0 : i64, scratch_operands = 0 : i64, tpu.core_type = #tpu.core_type<tc>, window_params = [{transform_indices = @transform_0, window_bounds = array<i64: 16, 32>}, {pipeline_mode = #tpu.pipeline_mode<synchronous>, transform_indices = @transform_1, window_bounds = array<i64: 32, 96>}, {pipeline_mode = #tpu.pipeline_mode<synchronous>, transform_indices = @transform_2, window_bounds = array<i64: 1, 96>}, {transform_indices = @transform_3, window_bounds = array<i64: 16, 32>}, {transform_indices = @transform_4, window_bounds = array<i64: 16, 32>}, {transform_indices = @transform_5, window_bounds = array<i64: 16, 32>}]} {
    %c0 = arith.constant 0 : index
    %c0_0 = arith.constant 0 : index
    %0 = vector.load %arg1[%c0, %c0_0] : memref<16x32xf32, #tpu.memory_space<vmem>>, vector<16x32xf32>
    %1 = arith.truncf %0 : vector<16x32xf32> to vector<16x32xbf16>
    %c0_1 = arith.constant 0 : index
    %c0_2 = arith.constant 0 : index
    %2 = vector.load %arg2[%c0_1, %c0_2] : memref<32x96xbf16, #tpu.memory_space<vmem>>, vector<32x96xbf16>
    %cst = arith.constant dense<0.000000e+00> : vector<16x96xf32>
    %3 = tpu.matmul %1, %2, %cst {dimension_numbers = #tpu.dot_dimension_numbers<[1], [0], [0], [1], [0, 0, 1, 1], [], []>} : vector<16x32xbf16>, vector<32x96xbf16>, vector<16x96xf32> -> vector<16x96xf32>
    %c0_3 = arith.constant 0 : index
    %c0_4 = arith.constant 0 : index
    %4 = vector.load %arg3[%c0_3, %c0_4] : memref<1x96xf32, #tpu.memory_space<vmem>>, vector<1x96xf32>
    %5 = vector.broadcast %4 : vector<1x96xf32> to vector<16x96xf32>
    %6 = arith.addf %3, %5 : vector<16x96xf32>
    %7 = vector.extract_strided_slice %6 {offsets = [0, 0], sizes = [16, 32], strides = [1, 1]} : vector<16x96xf32> to vector<16x32xf32>
    %8 = arith.truncf %7 : vector<16x32xf32> to vector<16x32xbf16>
    %c0_5 = arith.constant 0 : index
    %c0_6 = arith.constant 0 : index
    %9 = vector.load %arg4[%c0_5, %c0_6] : memref<16x32xbf16, #tpu.memory_space<vmem>>, vector<16x32xbf16>
    tpu.vector_store %arg4[%c0_5, %c0_6], %8 {strides = array<i32>} : memref<16x32xbf16, #tpu.memory_space<vmem>>, vector<16x32xbf16>,
    %10 = vector.extract_strided_slice %6 {offsets = [0, 32], sizes = [16, 32], strides = [1, 1]} : vector<16x96xf32> to vector<16x32xf32>
    %11 = arith.truncf %10 : vector<16x32xf32> to vector<16x32xbf16>
    %c0_7 = arith.constant 0 : index
    %c0_8 = arith.constant 0 : index
    %12 = vector.load %arg5[%c0_7, %c0_8] : memref<16x32xbf16, #tpu.memory_space<vmem>>, vector<16x32xbf16>
    tpu.vector_store %arg5[%c0_7, %c0_8], %11 {strides = array<i32>} : memref<16x32xbf16, #tpu.memory_space<vmem>>, vector<16x32xbf16>,
    %13 = vector.extract_strided_slice %6 {offsets = [0, 64], sizes = [16, 32], strides = [1, 1]} : vector<16x96xf32> to vector<16x32xf32>
    %14 = arith.truncf %13 : vector<16x32xf32> to vector<16x32xbf16>
    %c0_9 = arith.constant 0 : index
    %c0_10 = arith.constant 0 : index
    %15 = vector.load %arg6[%c0_9, %c0_10] : memref<16x32xbf16, #tpu.memory_space<vmem>>, vector<16x32xbf16>
    tpu.vector_store %arg6[%c0_9, %c0_10], %14 {strides = array<i32>} : memref<16x32xbf16, #tpu.memory_space<vmem>>, vector<16x32xbf16>,
    return
  }
  func.func @transform_0(%arg0: i32) -> (i32, i32) {
    %c0_i32 = arith.constant 0 : i32
    %c0_i32_0 = arith.constant 0 : i32
    return %arg0, %c0_i32 : i32, i32
  }
  func.func @transform_1(%arg0: i32) -> (i32, i32) {
    %c0_i32 = arith.constant 0 : i32
    %c0_i32_0 = arith.constant 0 : i32
    %c0_i32_1 = arith.constant 0 : i32
    return %c0_i32, %c0_i32_0 : i32, i32
  }
  func.func @transform_2(%arg0: i32) -> (i32, i32) {
    %c0_i32 = arith.constant 0 : i32
    %c0_i32_0 = arith.constant 0 : i32
    %c0_i32_1 = arith.constant 0 : i32
    return %c0_i32, %c0_i32_0 : i32, i32
  }
  func.func @transform_3(%arg0: i32) -> (i32, i32) {
    %c0_i32 = arith.constant 0 : i32
    %c0_i32_0 = arith.constant 0 : i32
    return %arg0, %c0_i32 : i32, i32
  }
  func.func @transform_4(%arg0: i32) -> (i32, i32) {
    %c0_i32 = arith.constant 0 : i32
    %c0_i32_0 = arith.constant 0 : i32
    return %arg0, %c0_i32 : i32, i32
  }
  func.func @transform_5(%arg0: i32) -> (i32, i32) {
    %c0_i32 = arith.constant 0 : i32
    %c0_i32_0 = arith.constant 0 : i32
    return %arg0, %c0_i32 : i32, i32
  }
}

</mosaic_0001>

<llo_original>
// kernel: tpu_custom_call.1
$region0: #{tpu_custom_call.1}
  #allocation0 [shape = 'u32[]', space=smem, size = 0x4, offset = 0x4, fixed_abs, tag = 'smem constant byte address 0x4 - core index']
  #allocation1 [shape = 'u32[144,128]{1,0:T(1,128)}', space=vmem, size = 0x12000, scoped, tag = 'internal scratch']
  %s0 = inlined_call_operand.hbm [shape: f32[16,32], index: 0, kind: input, shape index: {}]
  %s1 = inlined_call_operand.hbm [shape: bf16[32,96], index: 1, kind: input, shape index: {}]
  %s2 = inlined_call_operand.vmem [shape: f32[1,96], index: 2, kind: input, shape index: {}]
  %s3 = inlined_call_operand.hbm [shape: bf16[16,32], index: 3, kind: output, shape index: {0}]
  %s4 = inlined_call_operand.hbm [shape: bf16[16,32], index: 4, kind: output, shape index: {1}]
  %s5 = inlined_call_operand.hbm [shape: bf16[16,32], index: 5, kind: output, shape index: {2}]
  %6 = xla_tuple %s3, %s4, %s5
  %s7 = sld [smem:[#allocation0]]
  $region46: #{tpu_custom_call.1} parent=0
    _
  %s9 = ssub.s32 1, %s7
  %s10 = scalar_select 0, %s9, %s7
  $region1: #{tpu_custom_call.1} parent=0
    #allocation2 [shape = 'u8[8192]{0}', space=vmem, size = 0x2000, scoped, tag = 'input window, operand 0, single buffered']
    #allocation3 [shape = 's32[1]{0}', space=sflag, size = 0x4, scoped, tag = 'scoped memory for tpu_custom_call.1']
    #allocation4 [shape = 's32[1]{0}', space=sflag, size = 0x4, scoped, tag = 'scoped memory for tpu_custom_call.1']
    #allocation5 [shape = 'u8[8192]{0}', space=vmem, size = 0x2000, scoped, tag = 'input window, operand 1, single buffered']
    #allocation6 [shape = 's32[1]{0}', space=sflag, size = 0x4, scoped, tag = 'scoped memory for tpu_custom_call.1']
    #allocation7 [shape = 'u8[4096]{0}', space=vmem, size = 0x1000, scoped, tag = 'output window, operand 0, single buffered']
    #allocation8 [shape = 'u8[4096]{0}', space=vmem, size = 0x1000, scoped, tag = 'output window, operand 1, single buffered']
    #allocation9 [shape = 's32[1]{0}', space=sflag, size = 0x4, scoped, tag = 'scoped memory for tpu_custom_call.1']
    #allocation10 [shape = 'u8[4096]{0}', space=vmem, size = 0x1000, scoped, tag = 'output window, operand 2, single buffered']
    %11 = vsyncpa [#allocation3], 0
    %12 = vsyncpa [#allocation6], 0
    %13 = vsyncpa [#allocation4], 0
    %14 = vsyncpa [#allocation9], 0
    // Predicated region
    $region2: #{tpu_custom_call.1} parent=1 // pred_check
      _
    $region3: #{tpu_custom_call.1} parent=1 // pred_check_branch
      %16 = sbr.rel (0) target = $region5
    $region4: #{tpu_custom_call.1} parent=1 // pred_region
      %s18 = ssub.s32 256, 256
      %19 = vsyncadd [#allocation3], %s18
      %s20 = sshll.u32 [#allocation2], 4
      %s21 = int_to_ptr.vmem [resolvable:$true] %s20
      %26 = dma.hbm_to_vmem [thread:$0]  %s0, 256, %s21, [#allocation3], 128, 128, 8
    $region5: #{tpu_custom_call.1} parent=1 // pred_fallthru
      _
    // Predicated region
    $region6: #{tpu_custom_call.1} parent=1 // pred_check
      _
    $region7: #{tpu_custom_call.1} parent=1 // pred_check_branch
      %28 = sbr.rel (0) target = $region9
    $region8: #{tpu_custom_call.1} parent=1 // pred_region
      %s30 = ssub.s32 256, 256
      %31 = vsyncadd [#allocation6], %s30
      %s32 = sshll.u32 [#allocation5], 4
      %s33 = int_to_ptr.vmem [resolvable:$true] %s32
      %38 = dma.hbm_to_vmem [thread:$0]  %s1, 256, %s33, [#allocation6], 64, 64, 4
    $region9: #{tpu_custom_call.1} parent=1 // pred_fallthru
      _
    // Predicated region
    $region10: #{tpu_custom_call.1} parent=1 // pred_check
      _
    $region11: #{tpu_custom_call.1} parent=1 // pred_check_branch
      %40 = sbr.rel (0) target = $region13
    $region12: #{tpu_custom_call.1} parent=1 // pred_region
      _
    $region13: #{tpu_custom_call.1} parent=1 // pred_fallthru
      _
    // Predicated region
    $region14: #{tpu_custom_call.1} parent=1 // pred_check
      _
    $region15: #{tpu_custom_call.1} parent=1 // pred_check_branch
      %42 = sbr.rel (0) target = $region17
    $region16: #{tpu_custom_call.1} parent=1 // pred_region
      %43 = dma.done [#allocation3], 256
    $region17: #{tpu_custom_call.1} parent=1 // pred_fallthru
      _
    // Predicated region
    $region18: #{tpu_custom_call.1} parent=1 // pred_check
      _
    $region19: #{tpu_custom_call.1} parent=1 // pred_check_branch
      %45 = sbr.rel (0) target = $region21
    $region20: #{tpu_custom_call.1} parent=1 // pred_region
      %46 = dma.done [#allocation6], 256
    $region21: #{tpu_custom_call.1} parent=1 // pred_fallthru
      _
    %v48 = vld [vmem:[#allocation2] sm:$0xff]
    %v49 = vld [vmem:[#allocation2 + $0x8] sm:$0xff]
    %v50 = vpack.c.bf16 %v49, %v48
    %v51 = vld [vmem:[#allocation5] sm:$0xf]
    %v52 = vld [vmem:[#allocation5 + $0x4] sm:$0xf]
    %v53 = vld [vmem:[#allocation5 + $0x8] sm:$0xf]
    %v54 = vld [vmem:[#allocation5 + $0xc] sm:$0xf]
    %v55 = vld [vmem:[%s2] sm:$0x1]
    %v57 = vlaneseq
    %v58 = vshrl.u32 %v57, 7
    %v59 = vsub.s32 0, %v58
    %v60 = vrot.slane %v55, %v59
    %v66 = vunpack.c.l.b16 %v51
    %v67 = vunpack.c.l.b16 %v52
    %v68 = vunpack.c.l.b16 %v53
    %v69 = vunpack.c.l.b16 %v54
    %v70 = vpack.c.b16 %v67, %v66
    %v71 = vpack.c.b16 %v69, %v68
    %vm74 = vcmask 261120
    %v76 = vsel %vm74, %v50, 0
    %78 = vmatprep.subr.bf16.mxu0 0
    %79 = vmatpush1.bf16.msra.mxu0 %v70
    %80 = vmatprep.subr.bf16.mxu0 0
    %81 = vmatpush1.bf16.msra.mxu0 %v71
    %82 = vmatprep.subr.bf16.mxu0 0
    %83 = vmatpush1.bf16.msra.mxu0 0
    %84 = vmatprep.subr.bf16.mxu0 0
    %85 = vmatpush1.bf16.msra.mxu0 0
    %86 = vmatprep.subr.bf16.mxu0 0
    %87 = vmatpush1.bf16.msra.mxu0 0
    %88 = vmatprep.subr.bf16.mxu0 0
    %89 = vmatpush1.bf16.msra.mxu0 0
    %90 = vmatprep.subr.bf16.mxu0 0
    %91 = vmatpush1.bf16.msra.mxu0 0
    %92 = vmatprep.subr.bf16.mxu0 0
    %93 = vmatpush1.bf16.msra.mxu0 0
    %94 = vmatprep.subr.bf16.mxu0 0
    %95 = vmatpush1.bf16.msra.mxu0 0
    %96 = vmatprep.subr.bf16.mxu0 0
    %97 = vmatpush1.bf16.msra.mxu0 0
    %98 = vmatprep.subr.bf16.mxu0 0
    %99 = vmatpush1.bf16.msra.mxu0 0
    %100 = vmatprep.subr.bf16.mxu0 0
    %101 = vmatpush1.bf16.msra.mxu0 0
    %102 = vmatprep.subr.bf16.mxu0 0
    %103 = vmatpush1.bf16.msra.mxu0 0
    %104 = vmatprep.subr.bf16.mxu0 0
    %105 = vmatpush1.bf16.msra.mxu0 0
    %106 = vmatprep.subr.bf16.mxu0 0
    %107 = vmatpush1.bf16.msra.mxu0 0
    %108 = vmatprep.subr.bf16.mxu0 0
    %109 = vmatpush1.bf16.msra.mxu0 0
    %110 = vmatprep.mubr.bf16.mxu0 0
    %111 = vmatmul.mubr.bf16.gmra.mrb[0].mxu0 %v76
    %v112 = vpop.f32.mrb[0].mxu0
    %v113 = vadd.f32 %v60, %v112
    %v114 = vpop.f32.mrb[0].mxu0
    %v115 = vpop.f32.mrb[0].mxu0
    %v116 = vadd.f32 %v60, %v115
    %v117 = vpop.f32.mrb[0].mxu0
    %118 = vdwg.mxu0
    %v119 = vpack.c.bf16 %v116, %v113
    %v121 = vunpack.c.l.b16 %v119
    %v122 = vunpack.c.h.b16 %v119
    %v123 = vpack.c.b16 %v121, %v121
    %v124 = vpack.c.b16 %v122, %v122
    %vm127 = vcmask 257024
    %128 = vst.msk [vmem:[#allocation7] sm:$0xf] %vm127, %v123
    %129 = vst.msk [vmem:[#allocation7 + $0x4] sm:$0xf] %vm127, %v124
    %130 = vrot.lane.b32.xlu0 %v123, 96
    %v131 = vpop.permute.xlu0 %130
    %132 = vrot.lane.b32.xlu0 %v124, 96
    %v133 = vpop.permute.xlu0 %132
    %136 = vst.msk [vmem:[#allocation8] sm:$0xf] %vm127, %v131
    %137 = vst.msk [vmem:[#allocation8 + $0x4] sm:$0xf] %vm127, %v133
    %138 = vrot.lane.b32.xlu0 %v123, 64
    %v139 = vpop.permute.xlu0 %138
    %140 = vrot.lane.b32.xlu0 %v124, 64
    %v141 = vpop.permute.xlu0 %140
    %144 = vst.msk [vmem:[#allocation10] sm:$0xf] %vm127, %v139
    %145 = vst.msk [vmem:[#allocation10 + $0x4] sm:$0xf] %vm127, %v141
    // Predicated region
    $region22: #{tpu_custom_call.1} parent=1 // pred_check
      _
    $region23: #{tpu_custom_call.1} parent=1 // pred_check_branch
      %147 = sbr.rel (0) target = $region25
    $region24: #{tpu_custom_call.1} parent=1 // pred_region
      %s149 = ssub.s32 128, 128
      %150 = vsyncadd [#allocation4], %s149
      %s151 = sshll.u32 [#allocation7], 4
      %s152 = int_to_ptr.vmem [resolvable:$true] %s151
      %157 = dma.vmem_to_hbm [thread:$0]  %s152, 128, %s3, [#allocation4], 64, 64, 4
    $region25: #{tpu_custom_call.1} parent=1 // pred_fallthru
      _
    // Predicated region
    $region26: #{tpu_custom_call.1} parent=1 // pred_check
      _
    $region27: #{tpu_custom_call.1} parent=1 // pred_check_branch
      %159 = sbr.rel (0) target = $region29
    $region28: #{tpu_custom_call.1} parent=1 // pred_region
      %s161 = ssub.s32 128, 128
      %162 = vsyncadd [#allocation9], %s161
      %s163 = sshll.u32 [#allocation8], 4
      %s164 = int_to_ptr.vmem [resolvable:$true] %s163
      %169 = dma.vmem_to_hbm [thread:$0]  %s164, 128, %s4, [#allocation9], 64, 64, 4
    $region29: #{tpu_custom_call.1} parent=1 // pred_fallthru
      _
    // Predicated region
    $region30: #{tpu_custom_call.1} parent=1 // pred_check
      _
    $region31: #{tpu_custom_call.1} parent=1 // pred_check_branch
      %171 = sbr.rel (0) target = $region33
    $region32: #{tpu_custom_call.1} parent=1 // pred_region
      %s173 = ssub.s32 128, 128
      %174 = vsyncadd [#allocation9], %s173
      %s175 = sshll.u32 [#allocation10], 4
      %s176 = int_to_ptr.vmem [resolvable:$true] %s175
      %181 = dma.vmem_to_hbm [thread:$0]  %s176, 128, %s5, [#allocation9], 64, 64, 4
    $region33: #{tpu_custom_call.1} parent=1 // pred_fallthru
      _
    // Predicated region
    $region34: #{tpu_custom_call.1} parent=1 // pred_check
      _
    $region35: #{tpu_custom_call.1} parent=1 // pred_check_branch
      %183 = sbr.rel (0) target = $region37
    $region36: #{tpu_custom_call.1} parent=1 // pred_region
      %184 = dma.done [#allocation4], 128
    $region37: #{tpu_custom_call.1} parent=1 // pred_fallthru
      _
    // Predicated region
    $region38: #{tpu_custom_call.1} parent=1 // pred_check
      _
    $region39: #{tpu_custom_call.1} parent=1 // pred_check_branch
      %186 = sbr.rel (0) target = $region41
    $region40: #{tpu_custom_call.1} parent=1 // pred_region
      %187 = dma.done [#allocation9], 128
    $region41: #{tpu_custom_call.1} parent=1 // pred_fallthru
      _
    // Predicated region
    $region42: #{tpu_custom_call.1} parent=1 // pred_check
      _
    $region43: #{tpu_custom_call.1} parent=1 // pred_check_branch
      %189 = sbr.rel (0) target = $region45
    $region44: #{tpu_custom_call.1} parent=1 // pred_region
      %190 = dma.done [#allocation9], 128
    $region45: #{tpu_custom_call.1} parent=1 // pred_fallthru
      _
    %191 = vsyncpa [#allocation3], 1
    %192 = vsyncpa [#allocation6], 1
    %193 = vsyncpa [#allocation4], 1
    %194 = vsyncpa [#allocation9], 1

</llo_original>
